<compile_context>
chip_gen: v6e
topology: v6e:2x2x1
jax: 0.10.0
libtpu: 0.0.40
codegen_flags: <defaults>
</compile_context>

<pallas_src>
import functools

import jax
import jax.numpy as jnp
from jax.experimental import pallas as pl
from jax.experimental.pallas import tpu as pltpu


def _contrastive_loss_kernel(o1_ref, o2_ref, lab_ref, out_ref, *,
                             margin, eps, inv_b, feat_dim, pack, batch,
                             tile_rows, tiles_per_shard):
    c = pl.program_id(0)          # shard axis ("parallel": megacore on v7x)
    i = pl.program_id(1)          # row-tile within shard ("arbitrary": reduction)

    @pl.when(i == 0)
    def _init():
        out_ref[...] = jnp.zeros_like(out_ref)

    o1 = o1_ref[...].astype(jnp.float32)                          # (TB, W)
    o2 = o2_ref[...].astype(jnp.float32)
    diff = o1 - o2 + eps
    d2 = diff * diff                                               # (TB, W)

    if pack == 1:
        # Plain row-wise squared L2 norm.
        sq = jnp.sum(d2, axis=-1, keepdims=True)                   # (TB, 1)
    else:
        # Lane-dense packing: each row holds `pack` samples of width feat_dim.
        # Per-sample segment sum via a 0/1 (W, pack) matmul on the idle MXU.
        w = pack * feat_dim
        lane = jax.lax.broadcasted_iota(jnp.int32, (w, pack), 0)
        seg = jax.lax.broadcasted_iota(jnp.int32, (w, pack), 1)
        start = seg * feat_dim
        s_mat = ((lane >= start) & (lane < start + feat_dim)).astype(jnp.float32)
        sq = jnp.dot(d2, s_mat, preferred_element_type=jnp.float32,
                     precision=jax.lax.Precision.HIGHEST)          # (TB, pack)

    d = jnp.sqrt(sq)                                               # (TB, pack)
    lab = lab_ref[...].astype(jnp.float32)                         # (TB, pack)
    hinge = jnp.maximum(margin - d, 0.0)
    per_sample = (1.0 - lab) * sq + lab * (hinge * hinge)          # (TB, pack)

    # Mask samples that are padding (pack padding, partial last tile, OOB rows).
    t = c * tiles_per_shard + i                                    # global tile idx
    row = jax.lax.broadcasted_iota(jnp.int32, (tile_rows, pack), 0)
    col = jax.lax.broadcasted_iota(jnp.int32, (tile_rows, pack), 1)
    sample = (t * tile_rows + row) * pack + col
    per_sample = jnp.where(sample < batch, per_sample, 0.0)

    out_ref[...] += jnp.sum(per_sample, keepdims=True)             # (1, 1)

    @pl.when(i == tiles_per_shard - 1)
    def _finalize():
        out_ref[...] = out_ref[...] * inv_b


def contrastive_loss(output1, output2, label, margin=1.0, eps=1e-6):
    """Pallas TPU implementation of ContrastiveLoss.forward.

    output1, output2: (B, D) arrays (float32 or bfloat16)
    label:            (B,) or (B, 1)
    returns:          scalar float32 loss
    """
    B, D = output1.shape
    assert output2.shape == (B, D)

    # Lane-dense packing factor for small feature dims (fill all 128 lanes).
    pack = 128 // D if (D < 128 and 128 % D == 0) else 1

    label = jnp.reshape(label, (B,)).astype(jnp.float32)
    b_pad = ((B + pack - 1) // pack) * pack
    if b_pad != B:
        output1 = jnp.pad(output1, ((0, b_pad - B), (0, 0)))
        output2 = jnp.pad(output2, ((0, b_pad - B), (0, 0)))
        label = jnp.pad(label, ((0, b_pad - B),))

    rows = b_pad // pack
    w = pack * D
    o1 = output1.reshape(rows, w)
    o2 = output2.reshape(rows, w)
    lab = label.reshape(rows, pack)

    # Tile size: big enough to amortize per-grid-step overhead, bounded so
    # 2 inputs x 2 pipeline buffers stay well under the scoped VMEM limit
    # (conservative enough for v7x's smaller VMEM).
    itemsize = jnp.dtype(output1.dtype).itemsize
    vmem_tile_budget = 8 * 1024 * 1024
    max_tb = max(8, (vmem_tile_budget // (4 * w * itemsize)) // 8 * 8)
    tile_target = max(8, min(max_tb, 1024))
    if rows <= tile_target:
        tile_rows = rows
        n_tiles = 1
    else:
        tile_rows = tile_target
        n_tiles = (rows + tile_rows - 1) // tile_rows

    # Split row-tiles across the two TensorCores (v7x) when it divides evenly;
    # no effect on single-TC v5e/v6e beyond a size-1 extra grid axis.
    num_shards = 2 if (n_tiles >= 2 and n_tiles % 2 == 0) else 1
    tiles_per_shard = n_tiles // num_shards

    kernel = functools.partial(
        _contrastive_loss_kernel,
        margin=float(margin), eps=float(eps), inv_b=1.0 / float(B),
        feat_dim=D, pack=pack, batch=B,
        tile_rows=tile_rows, tiles_per_shard=tiles_per_shard)

    row_map = lambda c, i: (c * tiles_per_shard + i, 0)
    partials = pl.pallas_call(
        kernel,
        out_shape=jax.ShapeDtypeStruct((num_shards, 1), jnp.float32),
        grid_spec=pltpu.PrefetchScalarGridSpec(
            num_scalar_prefetch=0,
            grid=(num_shards, tiles_per_shard),
            in_specs=[
                pl.BlockSpec((tile_rows, w), row_map),
                pl.BlockSpec((tile_rows, w), row_map),
                pl.BlockSpec((tile_rows, pack), row_map),
            ],
            out_specs=pl.BlockSpec((1, 1), lambda c, i: (c, 0)),
        ),
        compiler_params=pltpu.CompilerParams(
            dimension_semantics=("parallel", "arbitrary")),
    )(o1, o2, lab)

    return jnp.sum(partials)


def _reference_contrastive_loss(o1, o2, label, margin=1.0, eps=1e-6):
    o1 = o1.astype(jnp.float32)
    o2 = o2.astype(jnp.float32)
    d = jnp.sqrt(jnp.sum((o1 - o2 + eps) ** 2, axis=-1, keepdims=True))
    lab = label.reshape(d.shape).astype(jnp.float32)
    return jnp.mean((1.0 - lab) * d**2 + lab * jnp.maximum(margin - d, 0.0) ** 2)


if __name__ == "__main__":
    key = jax.random.PRNGKey(0)
    k1, k2, k3 = jax.random.split(key, 3)

    # Primary small case (embedding pairs, as in the GAT training loop).
    B, D = 8, 32
    output1 = jax.random.normal(k1, (B, D), dtype=jnp.float32)
    output2 = jax.random.normal(k2, (B, D), dtype=jnp.float32)
    label = jax.random.bernoulli(k3, 0.5, (B, 1)).astype(jnp.float32)

    loss = jax.block_until_ready(contrastive_loss(output1, output2, label, margin=1.0))
    ref = _reference_contrastive_loss(output1, output2, label, margin=1.0)
    assert jnp.allclose(loss, ref, atol=1e-5, rtol=1e-5), (loss, ref)

    # Secondary case: exercises batch tiling, partial-tile masking, pack padding,
    # and the 2-shard (megacore) grid split.
    B2, D2 = 3999, 64
    ka, kb, kc = jax.random.split(jax.random.PRNGKey(1), 3)
    o1b = jax.random.normal(ka, (B2, D2), dtype=jnp.float32)
    o2b = jax.random.normal(kb, (B2, D2), dtype=jnp.float32)
    labb = jax.random.bernoulli(kc, 0.5, (B2, 1)).astype(jnp.float32)
    loss2 = jax.block_until_ready(contrastive_loss(o1b, o2b, labb, margin=1.0))
    ref2 = _reference_contrastive_loss(o1b, o2b, labb, margin=1.0)
    assert jnp.allclose(loss2, ref2, atol=1e-4, rtol=1e-4), (loss2, ref2)

    # Third case: bf16 inputs (native-dtype DMA) and D > 128 (no packing).
    B3, D3 = 100, 200
    kx, ky, kz = jax.random.split(jax.random.PRNGKey(2), 3)
    o1c = jax.random.normal(kx, (B3, D3), dtype=jnp.bfloat16)
    o2c = jax.random.normal(ky, (B3, D3), dtype=jnp.bfloat16)
    labc = jax.random.bernoulli(kz, 0.5, (B3, 1)).astype(jnp.float32)
    loss3 = jax.block_until_ready(contrastive_loss(o1c, o2c, labc, margin=1.0))
    ref3 = _reference_contrastive_loss(o1c, o2c, labc, margin=1.0)
    assert jnp.allclose(loss3, ref3, atol=1e-4, rtol=1e-4), (loss3, ref3)

    print("KERNEL_OK")
</pallas_src>

<mosaic_0001>
module attributes {stable_mosaic.version = 11 : i64} {
  func.func @_contrastive_loss_kernel(%arg0: i32, %arg1: i32, %arg2: memref<2x128xf32, #tpu.memory_space<vmem>>, %arg3: memref<2x128xf32, #tpu.memory_space<vmem>>, %arg4: memref<2x4xf32, #tpu.memory_space<vmem>>, %arg5: memref<1x1xf32, #tpu.memory_space<vmem>>) attributes {dimension_semantics = [#tpu.dimension_semantics<parallel>, #tpu.dimension_semantics<arbitrary>], iteration_bounds = array<i64: 1, 1>, scalar_prefetch = 0 : i64, scratch_operands = 0 : i64, tpu.core_type = #tpu.core_type<tc>, window_params = [{transform_indices = @transform_0, window_bounds = array<i64: 2, 128>}, {transform_indices = @transform_1, window_bounds = array<i64: 2, 128>}, {transform_indices = @transform_2, window_bounds = array<i64: 2, 4>}, {transform_indices = @transform_3, window_bounds = array<i64: 1, 1>}]} {
    %c0_i32 = arith.constant 0 : i32
    %0 = arith.cmpi eq, %arg1, %c0_i32 : i32
    %1 = arith.extui %0 : i1 to i32
    %c0_i32_0 = arith.constant 0 : i32
    %2 = arith.cmpi ne, %1, %c0_i32_0 : i32
    scf.if %2 {
      %cst_19 = arith.constant 0.000000e+00 : f32
      %58 = vector.broadcast %cst_19 : f32 to vector<1x1xf32>
      %c0_20 = arith.constant 0 : index
      %c0_21 = arith.constant 0 : index
      %59 = vector.load %arg5[%c0_20, %c0_21] : memref<1x1xf32, #tpu.memory_space<vmem>>, vector<1x1xf32>
      tpu.vector_store %arg5[%c0_20, %c0_21], %58 {strides = array<i32>} : memref<1x1xf32, #tpu.memory_space<vmem>>, vector<1x1xf32>,
    } else {
    }
    %c0 = arith.constant 0 : index
    %c0_1 = arith.constant 0 : index
    %3 = vector.load %arg2[%c0, %c0_1] : memref<2x128xf32, #tpu.memory_space<vmem>>, vector<2x128xf32>
    %c0_2 = arith.constant 0 : index
    %c0_3 = arith.constant 0 : index
    %4 = vector.load %arg3[%c0_2, %c0_3] : memref<2x128xf32, #tpu.memory_space<vmem>>, vector<2x128xf32>
    %5 = arith.subf %3, %4 : vector<2x128xf32>
    %cst = arith.constant 9.99999997E-7 : f32
    %6 = vector.broadcast %cst : f32 to vector<2x128xf32>
    %7 = arith.addf %5, %6 : vector<2x128xf32>
    %8 = arith.mulf %7, %7 : vector<2x128xf32>
    %9 = tpu.iota {dimensions = array<i32: 0>} : vector<128x4xi32>
    %10 = tpu.iota {dimensions = array<i32: 1>} : vector<128x4xi32>
    %c32_i32 = arith.constant 32 : i32
    %11 = vector.broadcast %c32_i32 : i32 to vector<128x4xi32>
    %12 = arith.muli %10, %11 : vector<128x4xi32>
    %13 = arith.cmpi sge, %9, %12 : vector<128x4xi32>
    %c32_i32_4 = arith.constant 32 : i32
    %14 = vector.broadcast %c32_i32_4 : i32 to vector<128x4xi32>
    %15 = arith.addi %12, %14 : vector<128x4xi32>
    %16 = arith.cmpi slt, %9, %15 : vector<128x4xi32>
    %17 = arith.andi %13, %16 : vector<128x4xi1>
    %18 = arith.extui %17 : vector<128x4xi1> to vector<128x4xi32>
    %19 = arith.sitofp %18 : vector<128x4xi32> to vector<128x4xf32>
    %cst_5 = arith.constant dense<0.000000e+00> : vector<2x4xf32>
    %20 = tpu.matmul %8, %19, %cst_5 {dimension_numbers = #tpu.dot_dimension_numbers<[1], [0], [0], [1], [0, 0, 1, 1], [], []>, precision = #tpu.contract_precision<fp32>} : vector<2x128xf32>, vector<128x4xf32>, vector<2x4xf32> -> vector<2x4xf32>
    %21 = math.sqrt %20 : vector<2x4xf32>
    %c0_6 = arith.constant 0 : index
    %c0_7 = arith.constant 0 : index
    %22 = vector.load %arg4[%c0_6, %c0_7] : memref<2x4xf32, #tpu.memory_space<vmem>>, vector<2x4xf32>
    %cst_8 = arith.constant 1.000000e+00 : f32
    %23 = vector.broadcast %cst_8 : f32 to vector<2x4xf32>
    %24 = arith.subf %23, %21 : vector<2x4xf32>
    %cst_9 = arith.constant 0.000000e+00 : f32
    %25 = vector.broadcast %cst_9 : f32 to vector<2x4xf32>
    %26 = arith.maximumf %24, %25 : vector<2x4xf32>
    %cst_10 = arith.constant 1.000000e+00 : f32
    %27 = vector.broadcast %cst_10 : f32 to vector<2x4xf32>
    %28 = arith.subf %27, %22 : vector<2x4xf32>
    %29 = arith.mulf %28, %20 : vector<2x4xf32>
    %30 = arith.mulf %26, %26 : vector<2x4xf32>
    %31 = arith.mulf %22, %30 : vector<2x4xf32>
    %32 = arith.addf %29, %31 : vector<2x4xf32>
    %c1_i32 = arith.constant 1 : i32
    %33 = arith.muli %arg0, %c1_i32 : i32
    %34 = arith.addi %33, %arg1 : i32
    %35 = tpu.iota {dimensions = array<i32: 0>} : vector<2x4xi32>
    %36 = tpu.iota {dimensions = array<i32: 1>} : vector<2x4xi32>
    %c2_i32 = arith.constant 2 : i32
    %37 = arith.muli %34, %c2_i32 : i32
    %38 = vector.broadcast %37 : i32 to vector<2x4xi32>
    %39 = arith.addi %38, %35 : vector<2x4xi32>
    %c4_i32 = arith.constant 4 : i32
    %40 = vector.broadcast %c4_i32 : i32 to vector<2x4xi32>
    %41 = arith.muli %39, %40 : vector<2x4xi32>
    %42 = arith.addi %41, %36 : vector<2x4xi32>
    %c8_i32 = arith.constant 8 : i32
    %43 = vector.broadcast %c8_i32 : i32 to vector<2x4xi32>
    %44 = arith.cmpi slt, %42, %43 : vector<2x4xi32>
    %cst_11 = arith.constant 0.000000e+00 : f32
    %45 = vector.broadcast %cst_11 : f32 to vector<2x4xf32>
    %46 = arith.select %44, %32, %45 : vector<2x4xi1>, vector<2x4xf32>
    %c0_12 = arith.constant 0 : index
    %c0_13 = arith.constant 0 : index
    %47 = vector.load %arg5[%c0_12, %c0_13] : memref<1x1xf32, #tpu.memory_space<vmem>>, vector<1x1xf32>
    %48 = vector.shape_cast %46 : vector<2x4xf32> to vector<1x2x4xf32>
    %cst_14 = arith.constant dense<0.000000e+00> : vector<1xf32>
    %49 = vector.multi_reduction <add>, %48, %cst_14 [1, 2] : vector<1x2x4xf32> to vector<1xf32>
    %50 = vector.shape_cast %49 : vector<1xf32> to vector<1x1x1xf32>
    %51 = vector.extract %50[0, 0, 0] : f32 from vector<1x1x1xf32>
    %52 = vector.broadcast %51 : f32 to vector<1x1xf32>
    %53 = arith.addf %47, %52 : vector<1x1xf32>
    %c0_15 = arith.constant 0 : index
    %c0_16 = arith.constant 0 : index
    %54 = vector.load %arg5[%c0_15, %c0_16] : memref<1x1xf32, #tpu.memory_space<vmem>>, vector<1x1xf32>
    tpu.vector_store %arg5[%c0_15, %c0_16], %53 {strides = array<i32>} : memref<1x1xf32, #tpu.memory_space<vmem>>, vector<1x1xf32>,
    %c0_i32_17 = arith.constant 0 : i32
    %55 = arith.cmpi eq, %arg1, %c0_i32_17 : i32
    %56 = arith.extui %55 : i1 to i32
    %c0_i32_18 = arith.constant 0 : i32
    %57 = arith.cmpi ne, %56, %c0_i32_18 : i32
    scf.if %57 {
      %c0_19 = arith.constant 0 : index
      %c0_20 = arith.constant 0 : index
      %58 = vector.load %arg5[%c0_19, %c0_20] : memref<1x1xf32, #tpu.memory_space<vmem>>, vector<1x1xf32>
      %cst_21 = arith.constant 1.250000e-01 : f32
      %59 = vector.broadcast %cst_21 : f32 to vector<1x1xf32>
      %60 = arith.mulf %58, %59 : vector<1x1xf32>
      %c0_22 = arith.constant 0 : index
      %c0_23 = arith.constant 0 : index
      %61 = vector.load %arg5[%c0_22, %c0_23] : memref<1x1xf32, #tpu.memory_space<vmem>>, vector<1x1xf32>
      tpu.vector_store %arg5[%c0_22, %c0_23], %60 {strides = array<i32>} : memref<1x1xf32, #tpu.memory_space<vmem>>, vector<1x1xf32>,
    } else {
    }
    return
  }
  func.func @transform_0(%arg0: i32, %arg1: i32) -> (i32, i32) {
    %c1_i32 = arith.constant 1 : i32
    %0 = arith.muli %arg0, %c1_i32 : i32
    %1 = arith.addi %0, %arg1 : i32
    %c0_i32 = arith.constant 0 : i32
    %c0_i32_0 = arith.constant 0 : i32
    return %1, %c0_i32 : i32, i32
  }
  func.func @transform_1(%arg0: i32, %arg1: i32) -> (i32, i32) {
    %c1_i32 = arith.constant 1 : i32
    %0 = arith.muli %arg0, %c1_i32 : i32
    %1 = arith.addi %0, %arg1 : i32
    %c0_i32 = arith.constant 0 : i32
    %c0_i32_0 = arith.constant 0 : i32
    return %1, %c0_i32 : i32, i32
  }
  func.func @transform_2(%arg0: i32, %arg1: i32) -> (i32, i32) {
    %c1_i32 = arith.constant 1 : i32
    %0 = arith.muli %arg0, %c1_i32 : i32
    %1 = arith.addi %0, %arg1 : i32
    %c0_i32 = arith.constant 0 : i32
    %c0_i32_0 = arith.constant 0 : i32
    return %1, %c0_i32 : i32, i32
  }
  func.func @transform_3(%arg0: i32, %arg1: i32) -> (i32, i32) {
    %c0_i32 = arith.constant 0 : i32
    %c0_i32_0 = arith.constant 0 : i32
    return %arg0, %c0_i32 : i32, i32
  }
}

</mosaic_0001>

<llo_original>
// kernel: tpu_custom_call.1
$region0: #{tpu_custom_call.1}
  #allocation0 [shape = 'u32[]', space=smem, size = 0x4, offset = 0x4, fixed_abs, tag = 'smem constant byte address 0x4 - core index']
  #allocation1 [shape = 'u32[144,128]{1,0:T(1,128)}', space=vmem, size = 0x12000, scoped, tag = 'internal scratch']
  %s0 = inlined_call_operand.hbm [shape: f32[2,128], index: 0, kind: input, shape index: {}]
  %s1 = inlined_call_operand.hbm [shape: f32[2,128], index: 1, kind: input, shape index: {}]
  %s2 = inlined_call_operand.vmem [shape: f32[2,4], index: 2, kind: input, shape index: {}]
  %s3 = inlined_call_operand.hbm [shape: f32[1,1], index: 3, kind: output, shape index: {}]
  %s4 = sld [smem:[#allocation0]]
  $region38: #{tpu_custom_call.1} parent=0
    _
  %s6 = ssub.s32 1, %s4
  %s7 = scalar_select 0, %s6, %s4
  $region1: #{tpu_custom_call.1} parent=0
    #allocation2 [shape = 'u8[1024]{0}', space=vmem, size = 0x400, scoped, tag = 'input window, operand 0, single buffered']
    #allocation3 [shape = 's32[1]{0}', space=sflag, size = 0x4, scoped, tag = 'scoped memory for tpu_custom_call.1']
    #allocation4 [shape = 's32[1]{0}', space=sflag, size = 0x4, scoped, tag = 'scoped memory for tpu_custom_call.1']
    #allocation5 [shape = 'u8[1024]{0}', space=vmem, size = 0x400, scoped, tag = 'input window, operand 1, single buffered']
    #allocation6 [shape = 's32[1]{0}', space=sflag, size = 0x4, scoped, tag = 'scoped memory for tpu_custom_call.1']
    #allocation7 [shape = 'u8[512]{0}', space=vmem, size = 0x400, scoped, tag = 'output window, operand 0, single buffered']
    %8 = vsyncpa [#allocation3], 0
    %9 = vsyncpa [#allocation6], 0
    %10 = vsyncpa [#allocation4], 0
    // Predicated region
    $region2: #{tpu_custom_call.1} parent=1 // pred_check
      _
    $region3: #{tpu_custom_call.1} parent=1 // pred_check_branch
      %12 = sbr.rel (0) target = $region5
    $region4: #{tpu_custom_call.1} parent=1 // pred_region
      %s13 = sadd.s32 0, 0
      %s15 = ssub.s32 32, 32
      %16 = vsyncadd [#allocation3], %s15
      %s17 = smul.addr %s13, 32
      %s18 = scalar_lea.hbm %s0, %s17
      %s20 = sshll.u32 [#allocation2], 4
      %s21 = int_to_ptr.vmem [resolvable:$true] %s20
      %23 = dma.hbm_to_vmem [thread:$0]  %s18, 32, %s21, [#allocation3]
    $region5: #{tpu_custom_call.1} parent=1 // pred_fallthru
      _
    // Predicated region
    $region6: #{tpu_custom_call.1} parent=1 // pred_check
      _
    $region7: #{tpu_custom_call.1} parent=1 // pred_check_branch
      %25 = sbr.rel (0) target = $region9
    $region8: #{tpu_custom_call.1} parent=1 // pred_region
      %s26 = sadd.s32 0, 0
      %s28 = ssub.s32 32, 32
      %29 = vsyncadd [#allocation6], %s28
      %s30 = smul.addr %s26, 32
      %s31 = scalar_lea.hbm %s1, %s30
      %s33 = sshll.u32 [#allocation5], 4
      %s34 = int_to_ptr.vmem [resolvable:$true] %s33
      %36 = dma.hbm_to_vmem [thread:$0]  %s31, 32, %s34, [#allocation6]
    $region9: #{tpu_custom_call.1} parent=1 // pred_fallthru
      _
    // Predicated region
    $region10: #{tpu_custom_call.1} parent=1 // pred_check
      _
    $region11: #{tpu_custom_call.1} parent=1 // pred_check_branch
      %38 = sbr.rel (0) target = $region13
    $region12: #{tpu_custom_call.1} parent=1 // pred_region
      %s39 = sadd.s32 0, 0
      %p40 = scmp.lt.s32.totalorder %s39, 0
      %s41 = scalar_select %p40, %s39, 0
      %s42 = smul.addr %s41, 2
      %s43 = scalar_lea.vmem %s2, %s42
      %s44 = sadd.s32 0, 0
    $region13: #{tpu_custom_call.1} parent=1 // pred_fallthru
      _
    // Predicated region
    $region14: #{tpu_custom_call.1} parent=1 // pred_check
      _
    $region15: #{tpu_custom_call.1} parent=1 // pred_check_branch
      %46 = sbr.rel (0) target = $region17
    $region16: #{tpu_custom_call.1} parent=1 // pred_region
      %47 = dma.done [#allocation3], 32
    $region17: #{tpu_custom_call.1} parent=1 // pred_fallthru
      _
    // Predicated region
    $region18: #{tpu_custom_call.1} parent=1 // pred_check
      _
    $region19: #{tpu_custom_call.1} parent=1 // pred_check_branch
      %49 = sbr.rel (0) target = $region21
    $region20: #{tpu_custom_call.1} parent=1 // pred_region
      %50 = dma.done [#allocation6], 32
    $region21: #{tpu_custom_call.1} parent=1 // pred_fallthru
      _
    %s51 = sadd.s32 0, 0
    %p52 = scmp.lt.s32.totalorder %s51, 0
    %s53 = scalar_select %p52, %s51, 0
    %s54 = smul.addr %s53, 2
    %s55 = scalar_lea.vmem %s2, %s54
    %s56 = sadd.s32 0, 0
    %s57 = sadd.s32 0, 0
    %s58 = sadd.s32 0, 0
    %p59 = scmp.lt.s32.totalorder %s58, 0
    %s60 = scalar_select %p59, %s58, 0
    %s61 = smul.addr %s60, 2
    %s62 = scalar_lea.vmem %s2, %s61
    %s63 = sadd.s32 0, 0
    %p64 = scmp.eq.s32.totalorder 0, 0
    // Predicated region
    $region22: #{tpu_custom_call.1} parent=1 // pred_check
      %p65 = pneg %p64
    $region23: #{tpu_custom_call.1} parent=1 // pred_check_branch
      %67 = sbr.rel (%p65) target = $region25
    $region24: #{tpu_custom_call.1} parent=1 // pred_region
      %vm68 = vcmask 0
      %69 = vst.msk [vmem:[#allocation7] sm:$0x1] %vm68, 0.0
    $region25: #{tpu_custom_call.1} parent=1 // pred_fallthru
      _
    %v70 = vld [vmem:[#allocation2] sm:$0x3]
    %v71 = vld [vmem:[#allocation5] sm:$0x3]
    %v72 = vsub.f32 %v70, %v71
    %v73 = vadd.f32 %v72, 1e-06
    %v74 = vmul.f32 %v73, %v73
    %v75 = vlaneseq
    %v76 = vshrl.u32 %v75, 7
    %v77 = vadd.s32 %v76, 8
    %v78 = vadd.s32 %v76, 16
    %v79 = vadd.s32 %v76, 24
    %v80 = vadd.s32 %v76, 32
    %v81 = vadd.s32 %v76, 40
    %v82 = vadd.s32 %v76, 48
    %v83 = vadd.s32 %v76, 56
    %v84 = vadd.s32 %v76, 64
    %v85 = vadd.s32 %v76, 72
    %v86 = vadd.s32 %v76, 80
    %v87 = vadd.s32 %v76, 88
    %v88 = vadd.s32 %v76, 96
    %v89 = vadd.s32 %v76, 104
    %v90 = vadd.s32 %v76, 112
    %v91 = vadd.s32 %v76, 120
    %v92 = vlaneseq
    %v93 = vand.u32 %v92, 127
    %v94 = vmul.u32 %v93, 32
    %vm95 = vcmp.ge.s32.totalorder %v76, %v94
    %vm96 = vcmp.ge.s32.totalorder %v77, %v94
    %vm97 = vcmp.ge.s32.totalorder %v78, %v94
    %vm98 = vcmp.ge.s32.totalorder %v79, %v94
    %vm99 = vcmp.ge.s32.totalorder %v80, %v94
    %vm100 = vcmp.ge.s32.totalorder %v81, %v94
    %vm101 = vcmp.ge.s32.totalorder %v82, %v94
    %vm102 = vcmp.ge.s32.totalorder %v83, %v94
    %vm103 = vcmp.ge.s32.totalorder %v84, %v94
    %vm104 = vcmp.ge.s32.totalorder %v85, %v94
    %vm105 = vcmp.ge.s32.totalorder %v86, %v94
    %vm106 = vcmp.ge.s32.totalorder %v87, %v94
    %vm107 = vcmp.ge.s32.totalorder %v88, %v94
    %vm108 = vcmp.ge.s32.totalorder %v89, %v94
    %vm109 = vcmp.ge.s32.totalorder %v90, %v94
    %vm110 = vcmp.ge.s32.totalorder %v91, %v94
    %v111 = vadd.s32 %v94, 32
    %vm112 = vcmp.lt.s32.totalorder %v76, %v111
    %vm113 = vcmp.lt.s32.totalorder %v77, %v111
    %vm114 = vcmp.lt.s32.totalorder %v78, %v111
    %vm115 = vcmp.lt.s32.totalorder %v79, %v111
    %vm116 = vcmp.lt.s32.totalorder %v80, %v111
    %vm117 = vcmp.lt.s32.totalorder %v81, %v111
    %vm118 = vcmp.lt.s32.totalorder %v82, %v111
    %vm119 = vcmp.lt.s32.totalorder %v83, %v111
    %vm120 = vcmp.lt.s32.totalorder %v84, %v111
    %vm121 = vcmp.lt.s32.totalorder %v85, %v111
    %vm122 = vcmp.lt.s32.totalorder %v86, %v111
    %vm123 = vcmp.lt.s32.totalorder %v87, %v111
    %vm124 = vcmp.lt.s32.totalorder %v88, %v111
    %vm125 = vcmp.lt.s32.totalorder %v89, %v111
    %vm126 = vcmp.lt.s32.totalorder %v90, %v111
    %vm127 = vcmp.lt.s32.totalorder %v91, %v111
    %vm128 = vmand %vm95, %vm112
    %vm129 = vmand %vm96, %vm113
    %vm130 = vmand %vm97, %vm114
    %vm131 = vmand %vm98, %vm115
    %vm132 = vmand %vm99, %vm116
    %vm133 = vmand %vm100, %vm117
    %vm134 = vmand %vm101, %vm118
    %vm135 = vmand %vm102, %vm119
    %vm136 = vmand %vm103, %vm120
    %vm137 = vmand %vm104, %vm121
    %vm138 = vmand %vm105, %vm122
    %vm139 = vmand %vm106, %vm123
    %vm140 = vmand %vm107, %vm124
    %vm141 = vmand %vm108, %vm125
    %vm142 = vmand %vm109, %vm126
    %vm143 = vmand %vm110, %vm127
    %v144 = vsel %vm128, 1, 0
    %v145 = vsel %vm129, 1, 0
    %v146 = vsel %vm130, 1, 0
    %v147 = vsel %vm131, 1, 0
    %v148 = vsel %vm132, 1, 0
    %v149 = vsel %vm133, 1, 0
    %v150 = vsel %vm134, 1, 0
    %v151 = vsel %vm135, 1, 0
    %v152 = vsel %vm136, 1, 0
    %v153 = vsel %vm137, 1, 0
    %v154 = vsel %vm138, 1, 0
    %v155 = vsel %vm139, 1, 0
    %v156 = vsel %vm140, 1, 0
    %v157 = vsel %vm141, 1, 0
    %v158 = vsel %vm142, 1, 0
    %v159 = vsel %vm143, 1, 0
    %v160 = vcvt.s32.f32 %v144
    %v161 = vcvt.s32.f32 %v145
    %v162 = vcvt.s32.f32 %v146
    %v163 = vcvt.s32.f32 %v147
    %v164 = vcvt.s32.f32 %v148
    %v165 = vcvt.s32.f32 %v149
    %v166 = vcvt.s32.f32 %v150
    %v167 = vcvt.s32.f32 %v151
    %v168 = vcvt.s32.f32 %v152
    %v169 = vcvt.s32.f32 %v153
    %v170 = vcvt.s32.f32 %v154
    %v171 = vcvt.s32.f32 %v155
    %v172 = vcvt.s32.f32 %v156
    %v173 = vcvt.s32.f32 %v157
    %v174 = vcvt.s32.f32 %v158
    %v175 = vcvt.s32.f32 %v159
    %176 = vmatprep.subr.mxu0 0.0
    %v177 = vand.u32 %v175, 4294901760
    %178 = vmatpush1.msra.mxu0 %v177
    %179 = vmatprep.subr.mxu0 0.0
    %v180 = vand.u32 %v174, 4294901760
    %181 = vmatpush1.msra.mxu0 %v180
    %182 = vmatprep.subr.mxu0 0.0
    %v183 = vand.u32 %v173, 4294901760
    %184 = vmatpush1.msra.mxu0 %v183
    %185 = vmatprep.subr.mxu0 0.0
    %v186 = vand.u32 %v172, 4294901760
    %187 = vmatpush1.msra.mxu0 %v186
    %188 = vmatprep.subr.mxu0 0.0
    %v189 = vand.u32 %v171, 4294901760
    %190 = vmatpush1.msra.mxu0 %v189
    %191 = vmatprep.subr.mxu0 0.0
    %v192 = vand.u32 %v170, 4294901760
    %193 = vmatpush1.msra.mxu0 %v192
    %194 = vmatprep.subr.mxu0 0.0
    %v195 = vand.u32 %v169, 4294901760
    %196 = vmatpush1.msra.mxu0 %v195
    %197 = vmatprep.subr.mxu0 0.0
    %v198 = vand.u32 %v168, 4294901760
    %199 = vmatpush1.msra.mxu0 %v198
    %200 = vmatprep.subr.mxu0 0.0
    %v201 = vand.u32 %v167, 4294901760
    %202 = vmatpush1.msra.mxu0 %v201
    %203 = vmatprep.subr.mxu0 0.0
    %v204 = vand.u32 %v166, 4294901760
    %205 = vmatpush1.msra.mxu0 %v204
    %206 = vmatprep.subr.mxu0 0.0
    %v207 = vand.u32 %v165, 4294901760
    %208 = vmatpush1.msra.mxu0 %v207
    %209 = vmatprep.subr.mxu0 0.0
    %v210 = vand.u32 %v164, 4294901760
    %211 = vmatpush1.msra.mxu0 %v210
    %212 = vmatprep.subr.mxu0 0.0
    %v213 = vand.u32 %v163, 4294901760
    %214 = vmatpush1.msra.mxu0 %v213
    %215 = vmatprep.subr.mxu0 0.0
    %v216 = vand.u32 %v162, 4294901760
    %217 = vmatpush1.msra.mxu0 %v216
    %218 = vmatprep.subr.mxu0 0.0
    %v219 = vand.u32 %v161, 4294901760
    %220 = vmatpush1.msra.mxu0 %v219
    %221 = vmatprep.subr.mxu0 0.0
    %v222 = vand.u32 %v160, 4294901760
    %223 = vmatpush1.msra.mxu0 %v222
    %224 = vmatprep.subr.mxu0 0.0
    %225 = vmatpush2.msra.mxu0 0.0
    %226 = vmatprep.subr.mxu0 0.0
    %227 = vmatpush2.msra.mxu0 0.0
    %228 = vmatprep.subr.mxu0 0.0
    %229 = vmatpush2.msra.mxu0 0.0
    %230 = vmatprep.subr.mxu0 0.0
    %231 = vmatpush2.msra.mxu0 0.0
    %232 = vmatprep.subr.mxu0 0.0
    %233 = vmatpush2.msra.mxu0 0.0
    %234 = vmatprep.subr.mxu0 0.0
    %235 = vmatpush2.msra.mxu0 0.0
    %236 = vmatprep.subr.mxu0 0.0
    %237 = vmatpush2.msra.mxu0 0.0
    %238 = vmatprep.subr.mxu0 0.0
    %239 = vmatpush2.msra.mxu0 0.0
    %240 = vmatprep.subr.mxu0 0.0
    %241 = vmatpush2.msra.mxu0 0.0
    %242 = vmatprep.subr.mxu0 0.0
    %243 = vmatpush2.msra.mxu0 0.0
    %244 = vmatprep.subr.mxu0 0.0
    %245 = vmatpush2.msra.mxu0 0.0
    %246 = vmatprep.subr.mxu0 0.0
    %247 = vmatpush2.msra.mxu0 0.0
    %248 = vmatprep.subr.mxu0 0.0
    %249 = vmatpush2.msra.mxu0 0.0
    %250 = vmatprep.subr.mxu0 0.0
    %251 = vmatpush2.msra.mxu0 0.0
    %252 = vmatprep.subr.mxu0 0.0
    %253 = vmatpush2.msra.mxu0 0.0
    %254 = vmatprep.subr.mxu0 0.0
    %255 = vmatpush2.msra.mxu0 0.0
    %256 = vmatprep.mubr.f32.mxu0 0.0
    %v257 = vand.u32 %v74, 4294901760
    %v258 = vsub.f32 %v74, %v257
    %v259 = vand.u32 %v258, 4294901760
    %v260 = vsub.f32 %v258, %v259
    %v261 = vand.u32 %v260, 4294901760
    %262 = vmatmul.mubr.f32.gmra.mxu0 %v261
    %v263 = vpop.f32.mrf.mxu0
    %v264 = vadd.f32 0.0, %v263
    %v265 = vpop.f32.mrf.mxu0
    %266 = vdwg.mxu0
    %267 = vmatprep.subr.mxu0 0.0
    %v268 = vand.u32 %v175, 4294901760
    %v269 = vsub.f32 %v175, %v268
    %v270 = vand.u32 %v269, 4294901760
    %v271 = vsub.f32 %v269, %v270
    %v272 = vand.u32 %v271, 4294901760
    %273 = vmatpush1.msra.mxu0 %v272
    %274 = vmatprep.subr.mxu0 0.0
    %v275 = vand.u32 %v174, 4294901760
    %v276 = vsub.f32 %v174, %v275
    %v277 = vand.u32 %v276, 4294901760
    %v278 = vsub.f32 %v276, %v277
    %v279 = vand.u32 %v278, 4294901760
    %280 = vmatpush1.msra.mxu0 %v279
    %281 = vmatprep.subr.mxu0 0.0
    %v282 = vand.u32 %v173, 4294901760
    %v283 = vsub.f32 %v173, %v282
    %v284 = vand.u32 %v283, 4294901760
    %v285 = vsub.f32 %v283, %v284
    %v286 = vand.u32 %v285, 4294901760
    %287 = vmatpush1.msra.mxu0 %v286
    %288 = vmatprep.subr.mxu0 0.0
    %v289 = vand.u32 %v172, 4294901760
    %v290 = vsub.f32 %v172, %v289
    %v291 = vand.u32 %v290, 4294901760
    %v292 = vsub.f32 %v290, %v291
    %v293 = vand.u32 %v292, 4294901760
    %294 = vmatpush1.msra.mxu0 %v293
    %295 = vmatprep.subr.mxu0 0.0
    %v296 = vand.u32 %v171, 4294901760
    %v297 = vsub.f32 %v171, %v296
    %v298 = vand.u32 %v297, 4294901760
    %v299 = vsub.f32 %v297, %v298
    %v300 = vand.u32 %v299, 4294901760
    %301 = vmatpush1.msra.mxu0 %v300
    %302 = vmatprep.subr.mxu0 0.0
    %v303 = vand.u32 %v170, 4294901760
    %v304 = vsub.f32 %v170, %v303
    %v305 = vand.u32 %v304, 4294901760
    %v306 = vsub.f32 %v304, %v305
    %v307 = vand.u32 %v306, 4294901760
    %308 = vmatpush1.msra.mxu0 %v307
    %309 = vmatprep.subr.mxu0 0.0
    %v310 = vand.u32 %v169, 4294901760
    %v311 = vsub.f32 %v169, %v310
    %v312 = vand.u32 %v311, 4294901760
    %v313 = vsub.f32 %v311, %v312
    %v314 = vand.u32 %v313, 4294901760
    %315 = vmatpush1.msra.mxu0 %v314
    %316 = vmatprep.subr.mxu0 0.0
    %v317 = vand.u32 %v168, 4294901760
    %v318 = vsub.f32 %v168, %v317
    %v319 = vand.u32 %v318, 4294901760
    %v320 = vsub.f32 %v318, %v319
    %v321 = vand.u32 %v320, 4294901760
    %322 = vmatpush1.msra.mxu0 %v321
    %323 = vmatprep.subr.mxu0 0.0
    %v324 = vand.u32 %v167, 4294901760
    %v325 = vsub.f32 %v167, %v324
    %v326 = vand.u32 %v325, 4294901760
    %v327 = vsub.f32 %v325, %v326
    %v328 = vand.u32 %v327, 4294901760
    %329 = vmatpush1.msra.mxu0 %v328
    %330 = vmatprep.subr.mxu0 0.0
    %v331 = vand.u32 %v166, 4294901760
    %v332 = vsub.f32 %v166, %v331
    %v333 = vand.u32 %v332, 4294901760
    %v334 = vsub.f32 %v332, %v333
    %v335 = vand.u32 %v334, 4294901760
    %336 = vmatpush1.msra.mxu0 %v335
    %337 = vmatprep.subr.mxu0 0.0
    %v338 = vand.u32 %v165, 4294901760
    %v339 = vsub.f32 %v165, %v338
    %v340 = vand.u32 %v339, 4294901760
    %v341 = vsub.f32 %v339, %v340
    %v342 = vand.u32 %v341, 4294901760
    %343 = vmatpush1.msra.mxu0 %v342
    %344 = vmatprep.subr.mxu0 0.0
    %v345 = vand.u32 %v164, 4294901760
    %v346 = vsub.f32 %v164, %v345
    %v347 = vand.u32 %v346, 4294901760
    %v348 = vsub.f32 %v346, %v347
    %v349 = vand.u32 %v348, 4294901760
    %350 = vmatpush1.msra.mxu0 %v349
    %351 = vmatprep.subr.mxu0 0.0
    %v352 = vand.u32 %v163, 4294901760
    %v353 = vsub.f32 %v163, %v352
    %v354 = vand.u32 %v353, 4294901760
    %v355 = vsub.f32 %v353, %v354
    %v356 = vand.u32 %v355, 4294901760
    %357 = vmatpush1.msra.mxu0 %v356
    %358 = vmatprep.subr.mxu0 0.0
    %v359 = vand.u32 %v162, 4294901760
    %v360 = vsub.f32 %v162, %v359
    %v361 = vand.u32 %v360, 4294901760
    %v362 = vsub.f32 %v360, %v361
    %v363 = vand.u32 %v362, 4294901760
    %364 = vmatpush1.msra.mxu0 %v363
    %365 = vmatprep.subr.mxu0 0.0
    %v366 = vand.u32 %v161, 4294901760
    %v367 = vsub.f32 %v161, %v366
    %v368 = vand.u32 %v367, 4294901760
    %v369 = vsub.f32 %v367, %v368
    %v370 = vand.u32 %v369, 4294901760
    %371 = vmatpush1.msra.mxu0 %v370
    %372 = vmatprep.subr.mxu0 0.0
    %v373 = vand.u32 %v160, 4294901760
    %v374 = vsub.f32 %v160, %v373
    %v375 = vand.u32 %v374, 4294901760
    %v376 = vsub.f32 %v374, %v375
    %v377 = vand.u32 %v376, 4294901760
    %378 = vmatpush1.msra.mxu0 %v377
    %379 = vmatprep.subr.mxu0 0.0
    %380 = vmatpush2.msra.mxu0 0.0
    %381 = vmatprep.subr.mxu0 0.0
    %382 = vmatpush2.msra.mxu0 0.0
    %383 = vmatprep.subr.mxu0 0.0
    %384 = vmatpush2.msra.mxu0 0.0
    %385 = vmatprep.subr.mxu0 0.0
    %386 = vmatpush2.msra.mxu0 0.0
    %387 = vmatprep.subr.mxu0 0.0
    %388 = vmatpush2.msra.mxu0 0.0
    %389 = vmatprep.subr.mxu0 0.0
    %390 = vmatpush2.msra.mxu0 0.0
    %391 = vmatprep.subr.mxu0 0.0
    %392 = vmatpush2.msra.mxu0 0.0
    %393 = vmatprep.subr.mxu0 0.0
    %394 = vmatpush2.msra.mxu0 0.0
    %395 = vmatprep.subr.mxu0 0.0
    %396 = vmatpush2.msra.mxu0 0.0
    %397 = vmatprep.subr.mxu0 0.0
    %398 = vmatpush2.msra.mxu0 0.0
    %399 = vmatprep.subr.mxu0 0.0
    %400 = vmatpush2.msra.mxu0 0.0
    %401 = vmatprep.subr.mxu0 0.0
    %402 = vmatpush2.msra.mxu0 0.0
    %403 = vmatprep.subr.mxu0 0.0
    %404 = vmatpush2.msra.mxu0 0.0
    %405 = vmatprep.subr.mxu0 0.0
    %406 = vmatpush2.msra.mxu0 0.0
    %407 = vmatprep.subr.mxu0 0.0
    %408 = vmatpush2.msra.mxu0 0.0
    %409 = vmatprep.subr.mxu0 0.0
    %410 = vmatpush2.msra.mxu0 0.0
    %411 = vmatprep.mubr.f32.mxu0 0.0
    %v412 = vand.u32 %v74, 4294901760
    %413 = vmatmul.mubr.f32.gmra.mxu0 %v412
    %v414 = vpop.f32.mrf.mxu0
    %v415 = vadd.f32 %v264, %v414
    %v416 = vpop.f32.mrf.mxu0
    %417 = vdwg.mxu0
    %418 = vmatprep.subr.mxu0 0.0
    %v419 = vand.u32 %v175, 4294901760
    %v420 = vsub.f32 %v175, %v419
    %421 = vmatpush1.msra.mxu0 %v420
    %422 = vmatprep.subr.mxu0 0.0
    %v423 = vand.u32 %v174, 4294901760
    %v424 = vsub.f32 %v174, %v423
    %425 = vmatpush1.msra.mxu0 %v424
    %426 = vmatprep.subr.mxu0 0.0
    %v427 = vand.u32 %v173, 4294901760
    %v428 = vsub.f32 %v173, %v427
    %429 = vmatpush1.msra.mxu0 %v428
    %430 = vmatprep.subr.mxu0 0.0
    %v431 = vand.u32 %v172, 4294901760
    %v432 = vsub.f32 %v172, %v431
    %433 = vmatpush1.msra.mxu0 %v432
    %434 = vmatprep.subr.mxu0 0.0
    %v435 = vand.u32 %v171, 4294901760
    %v436 = vsub.f32 %v171, %v435
    %437 = vmatpush1.msra.mxu0 %v436
    %438 = vmatprep.subr.mxu0 0.0
    %v439 = vand.u32 %v170, 4294901760
    %v440 = vsub.f32 %v170, %v439
    %441 = vmatpush1.msra.mxu0 %v440
    %442 = vmatprep.subr.mxu0 0.0
    %v443 = vand.u32 %v169, 4294901760
    %v444 = vsub.f32 %v169, %v443
    %445 = vmatpush1.msra.mxu0 %v444
    %446 = vmatprep.subr.mxu0 0.0
    %v447 = vand.u32 %v168, 4294901760
    %v448 = vsub.f32 %v168, %v447
    %449 = vmatpush1.msra.mxu0 %v448
    %450 = vmatprep.subr.mxu0 0.0
    %v451 = vand.u32 %v167, 4294901760
    %v452 = vsub.f32 %v167, %v451
    %453 = vmatpush1.msra.mxu0 %v452
    %454 = vmatprep.subr.mxu0 0.0
    %v455 = vand.u32 %v166, 4294901760
    %v456 = vsub.f32 %v166, %v455
    %457 = vmatpush1.msra.mxu0 %v456
    %458 = vmatprep.subr.mxu0 0.0
    %v459 = vand.u32 %v165, 4294901760
    %v460 = vsub.f32 %v165, %v459
    %461 = vmatpush1.msra.mxu0 %v460
    %462 = vmatprep.subr.mxu0 0.0
    %v463 = vand.u32 %v164, 4294901760
    %v464 = vsub.f32 %v164, %v463
    %465 = vmatpush1.msra.mxu0 %v464
    %466 = vmatprep.subr.mxu0 0.0
    %v467 = vand.u32 %v163, 4294901760
    %v468 = vsub.f32 %v163, %v467
    %469 = vmatpush1.msra.mxu0 %v468
    %470 = vmatprep.subr.mxu0 0.0
    %v471 = vand.u32 %v162, 4294901760
    %v472 = vsub.f32 %v162, %v471
    %473 = vmatpush1.msra.mxu0 %v472
    %474 = vmatprep.subr.mxu0 0.0
    %v475 = vand.u32 %v161, 4294901760
    %v476 = vsub.f32 %v161, %v475
    %477 = vmatpush1.msra.mxu0 %v476
    %478 = vmatprep.subr.mxu0 0.0
    %v479 = vand.u32 %v160, 4294901760
    %v480 = vsub.f32 %v160, %v479
    %481 = vmatpush1.msra.mxu0 %v480
    %482 = vmatprep.subr.mxu0 0.0
    %483 = vmatpush2.msra.mxu0 0.0
    %484 = vmatprep.subr.mxu0 0.0
    %485 = vmatpush2.msra.mxu0 0.0
    %486 = vmatprep.subr.mxu0 0.0
    %487 = vmatpush2.msra.mxu0 0.0
    %488 = vmatprep.subr.mxu0 0.0
    %489 = vmatpush2.msra.mxu0 0.0
    %490 = vmatprep.subr.mxu0 0.0
    %491 = vmatpush2.msra.mxu0 0.0
    %492 = vmatprep.subr.mxu0 0.0
    %493 = vmatpush2.msra.mxu0 0.0
    %494 = vmatprep.subr.mxu0 0.0
    %495 = vmatpush2.msra.mxu0 0.0
    %496 = vmatprep.subr.mxu0 0.0
    %497 = vmatpush2.msra.mxu0 0.0
    %498 = vmatprep.subr.mxu0 0.0
    %499 = vmatpush2.msra.mxu0 0.0
    %500 = vmatprep.subr.mxu0 0.0
    %501 = vmatpush2.msra.mxu0 0.0
    %502 = vmatprep.subr.mxu0 0.0
    %503 = vmatpush2.msra.mxu0 0.0
    %504 = vmatprep.subr.mxu0 0.0
    %505 = vmatpush2.msra.mxu0 0.0
    %506 = vmatprep.subr.mxu0 0.0
    %507 = vmatpush2.msra.mxu0 0.0
    %508 = vmatprep.subr.mxu0 0.0
    %509 = vmatpush2.msra.mxu0 0.0
    %510 = vmatprep.subr.mxu0 0.0
    %511 = vmatpush2.msra.mxu0 0.0
    %512 = vmatprep.subr.mxu0 0.0
    %513 = vmatpush2.msra.mxu0 0.0
    %514 = vmatprep.mubr.f32.mxu0 0.0
    %v515 = vand.u32 %v74, 4294901760
    %v516 = vsub.f32 %v74, %v515
    %517 = vmatmul.mubr.f32.gmra.mxu0 %v516
    %v518 = vpop.f32.mrf.mxu0
    %v519 = vadd.f32 %v415, %v518
    %v520 = vpop.f32.mrf.mxu0
    %521 = vdwg.mxu0
    %522 = vmatprep.subr.mxu0 0.0
    %v523 = vand.u32 %v175, 4294901760
    %524 = vmatpush1.msra.mxu0 %v523
    %525 = vmatprep.subr.mxu0 0.0
    %v526 = vand.u32 %v174, 4294901760
    %527 = vmatpush1.msra.mxu0 %v526
    %528 = vmatprep.subr.mxu0 0.0
    %v529 = vand.u32 %v173, 4294901760
    %530 = vmatpush1.msra.mxu0 %v529
    %531 = vmatprep.subr.mxu0 0.0
    %v532 = vand.u32 %v172, 4294901760
    %533 = vmatpush1.msra.mxu0 %v532
    %534 = vmatprep.subr.mxu0 0.0
    %v535 = vand.u32 %v171, 4294901760
    %536 = vmatpush1.msra.mxu0 %v535
    %537 = vmatprep.subr.mxu0 0.0
    %v538 = vand.u32 %v170, 4294901760
    %539 = vmatpush1.msra.mxu0 %v538
    %540 = vmatprep.subr.mxu0 0.0
    %v541 = vand.u32 %v169, 4294901760
    %542 = vmatpush1.msra.mxu0 %v541
    %543 = vmatprep.subr.mxu0 0.0
    %v544 = vand.u32 %v168, 4294901760
    %545 = vmatpush1.msra.mxu0 %v544
    %546 = vmatprep.subr.mxu0 0.0
    %v547 = vand.u32 %v167, 4294901760
    %548 = vmatpush1.msra.mxu0 %v547
    %549 = vmatprep.subr.mxu0 0.0
    %v550 = vand.u32 %v166, 4294901760
    %551 = vmatpush1.msra.mxu0 %v550
    %552 = vmatprep.subr.mxu0 0.0
    %v553 = vand.u32 %v165, 4294901760
    %554 = vmatpush1.msra.mxu0 %v553
    %555 = vmatprep.subr.mxu0 0.0
    %v556 = vand.u32 %v164, 4294901760
    %557 = vmatpush1.msra.mxu0 %v556
    %558 = vmatprep.subr.mxu0 0.0
    %v559 = vand.u32 %v163, 4294901760
    %560 = vmatpush1.msra.mxu0 %v559
    %561 = vmatprep.subr.mxu0 0.0
    %v562 = vand.u32 %v162, 4294901760
    %563 = vmatpush1.msra.mxu0 %v562
    %564 = vmatprep.subr.mxu0 0.0
    %v565 = vand.u32 %v161, 4294901760
    %566 = vmatpush1.msra.mxu0 %v565
    %567 = vmatprep.subr.mxu0 0.0
    %v568 = vand.u32 %v160, 4294901760
    %569 = vmatpush1.msra.mxu0 %v568
    %570 = vmatprep.subr.mxu0 0.0
    %571 = vmatpush2.msra.mxu0 0.0
    %572 = vmatprep.subr.mxu0 0.0
    %573 = vmatpush2.msra.mxu0 0.0
    %574 = vmatprep.subr.mxu0 0.0
    %575 = vmatpush2.msra.mxu0 0.0
    %576 = vmatprep.subr.mxu0 0.0
    %577 = vmatpush2.msra.mxu0 0.0
    %578 = vmatprep.subr.mxu0 0.0
    %579 = vmatpush2.msra.mxu0 0.0
    %580 = vmatprep.subr.mxu0 0.0
    %581 = vmatpush2.msra.mxu0 0.0
    %582 = vmatprep.subr.mxu0 0.0
    %583 = vmatpush2.msra.mxu0 0.0
    %584 = vmatprep.subr.mxu0 0.0
    %585 = vmatpush2.msra.mxu0 0.0
    %586 = vmatprep.subr.mxu0 0.0
    %587 = vmatpush2.msra.mxu0 0.0
    %588 = vmatprep.subr.mxu0 0.0
    %589 = vmatpush2.msra.mxu0 0.0
    %590 = vmatprep.subr.mxu0 0.0
    %591 = vmatpush2.msra.mxu0 0.0
    %592 = vmatprep.subr.mxu0 0.0
    %593 = vmatpush2.msra.mxu0 0.0
    %594 = vmatprep.subr.mxu0 0.0
    %595 = vmatpush2.msra.mxu0 0.0
    %596 = vmatprep.subr.mxu0 0.0
    %597 = vmatpush2.msra.mxu0 0.0
    %598 = vmatprep.subr.mxu0 0.0
    %599 = vmatpush2.msra.mxu0 0.0
    %600 = vmatprep.subr.mxu0 0.0
    %601 = vmatpush2.msra.mxu0 0.0
    %602 = vmatprep.mubr.f32.mxu0 0.0
    %v603 = vand.u32 %v74, 4294901760
    %v604 = vsub.f32 %v74, %v603
    %v605 = vand.u32 %v604, 4294901760
    %606 = vmatmul.mubr.f32.gmra.mxu0 %v605
    %v607 = vpop.f32.mrf.mxu0
    %v608 = vadd.f32 %v519, %v607
    %v609 = vpop.f32.mrf.mxu0
    %610 = vdwg.mxu0
    %611 = vmatprep.subr.mxu0 0.0
    %v612 = vand.u32 %v175, 4294901760
    %v613 = vsub.f32 %v175, %v612
    %v614 = vand.u32 %v613, 4294901760
    %615 = vmatpush1.msra.mxu0 %v614
    %616 = vmatprep.subr.mxu0 0.0
    %v617 = vand.u32 %v174, 4294901760
    %v618 = vsub.f32 %v174, %v617
    %v619 = vand.u32 %v618, 4294901760
    %620 = vmatpush1.msra.mxu0 %v619
    %621 = vmatprep.subr.mxu0 0.0
    %v622 = vand.u32 %v173, 4294901760
    %v623 = vsub.f32 %v173, %v622
    %v624 = vand.u32 %v623, 4294901760
    %625 = vmatpush1.msra.mxu0 %v624
    %626 = vmatprep.subr.mxu0 0.0
    %v627 = vand.u32 %v172, 4294901760
    %v628 = vsub.f32 %v172, %v627
    %v629 = vand.u32 %v628, 4294901760
    %630 = vmatpush1.msra.mxu0 %v629
    %631 = vmatprep.subr.mxu0 0.0
    %v632 = vand.u32 %v171, 4294901760
    %v633 = vsub.f32 %v171, %v632
    %v634 = vand.u32 %v633, 4294901760
    %635 = vmatpush1.msra.mxu0 %v634
    %636 = vmatprep.subr.mxu0 0.0
    %v637 = vand.u32 %v170, 4294901760
    %v638 = vsub.f32 %v170, %v637
    %v639 = vand.u32 %v638, 4294901760
    %640 = vmatpush1.msra.mxu0 %v639
    %641 = vmatprep.subr.mxu0 0.0
    %v642 = vand.u32 %v169, 4294901760
    %v643 = vsub.f32 %v169, %v642
    %v644 = vand.u32 %v643, 4294901760
    %645 = vmatpush1.msra.mxu0 %v644
    %646 = vmatprep.subr.mxu0 0.0
    %v647 = vand.u32 %v168, 4294901760
    %v648 = vsub.f32 %v168, %v647
    %v649 = vand.u32 %v648, 4294901760
    %650 = vmatpush1.msra.mxu0 %v649
    %651 = vmatprep.subr.mxu0 0.0
    %v652 = vand.u32 %v167, 4294901760
    %v653 = vsub.f32 %v167, %v652
    %v654 = vand.u32 %v653, 4294901760
    %655 = vmatpush1.msra.mxu0 %v654
    %656 = vmatprep.subr.mxu0 0.0
    %v657 = vand.u32 %v166, 4294901760
    %v658 = vsub.f32 %v166, %v657
    %v659 = vand.u32 %v658, 4294901760
    %660 = vmatpush1.msra.mxu0 %v659
    %661 = vmatprep.subr.mxu0 0.0
    %v662 = vand.u32 %v165, 4294901760
    %v663 = vsub.f32 %v165, %v662
    %v664 = vand.u32 %v663, 4294901760
    %665 = vmatpush1.msra.mxu0 %v664
    %666 = vmatprep.subr.mxu0 0.0
    %v667 = vand.u32 %v164, 4294901760
    %v668 = vsub.f32 %v164, %v667
    %v669 = vand.u32 %v668, 4294901760
    %670 = vmatpush1.msra.mxu0 %v669
    %671 = vmatprep.subr.mxu0 0.0
    %v672 = vand.u32 %v163, 4294901760
    %v673 = vsub.f32 %v163, %v672
    %v674 = vand.u32 %v673, 4294901760
    %675 = vmatpush1.msra.mxu0 %v674
    %676 = vmatprep.subr.mxu0 0.0
    %v677 = vand.u32 %v162, 4294901760
    %v678 = vsub.f32 %v162, %v677
    %v679 = vand.u32 %v678, 4294901760
    %680 = vmatpush1.msra.mxu0 %v679
    %681 = vmatprep.subr.mxu0 0.0
    %v682 = vand.u32 %v161, 4294901760
    %v683 = vsub.f32 %v161, %v682
    %v684 = vand.u32 %v683, 4294901760
    %685 = vmatpush1.msra.mxu0 %v684
    %686 = vmatprep.subr.mxu0 0.0
    %v687 = vand.u32 %v160, 4294901760
    %v688 = vsub.f32 %v160, %v687
    %v689 = vand.u32 %v688, 4294901760
    %690 = vmatpush1.msra.mxu0 %v689
    %691 = vmatprep.subr.mxu0 0.0
    %692 = vmatpush2.msra.mxu0 0.0
    %693 = vmatprep.subr.mxu0 0.0
    %694 = vmatpush2.msra.mxu0 0.0
    %695 = vmatprep.subr.mxu0 0.0
    %696 = vmatpush2.msra.mxu0 0.0
    %697 = vmatprep.subr.mxu0 0.0
    %698 = vmatpush2.msra.mxu0 0.0
    %699 = vmatprep.subr.mxu0 0.0
    %700 = vmatpush2.msra.mxu0 0.0
    %701 = vmatprep.subr.mxu0 0.0
    %702 = vmatpush2.msra.mxu0 0.0
    %703 = vmatprep.subr.mxu0 0.0
    %704 = vmatpush2.msra.mxu0 0.0
    %705 = vmatprep.subr.mxu0 0.0
    %706 = vmatpush2.msra.mxu0 0.0
    %707 = vmatprep.subr.mxu0 0.0
    %708 = vmatpush2.msra.mxu0 0.0
    %709 = vmatprep.subr.mxu0 0.0
    %710 = vmatpush2.msra.mxu0 0.0
    %711 = vmatprep.subr.mxu0 0.0
    %712 = vmatpush2.msra.mxu0 0.0
    %713 = vmatprep.subr.mxu0 0.0
    %714 = vmatpush2.msra.mxu0 0.0
    %715 = vmatprep.subr.mxu0 0.0
    %716 = vmatpush2.msra.mxu0 0.0
    %717 = vmatprep.subr.mxu0 0.0
    %718 = vmatpush2.msra.mxu0 0.0
    %719 = vmatprep.subr.mxu0 0.0
    %720 = vmatpush2.msra.mxu0 0.0
    %721 = vmatprep.subr.mxu0 0.0
    %722 = vmatpush2.msra.mxu0 0.0
    %723 = vmatprep.mubr.f32.mxu0 0.0
    %v724 = vand.u32 %v74, 4294901760
    %725 = vmatmul.mubr.f32.gmra.mxu0 %v724
    %v726 = vpop.f32.mrf.mxu0
    %v727 = vadd.f32 %v608, %v726
    %v728 = vpop.f32.mrf.mxu0
    %729 = vdwg.mxu0
    %730 = vmatprep.subr.mxu0 0.0
    %v731 = vand.u32 %v175, 4294901760
    %732 = vmatpush1.msra.mxu0 %v731
    %733 = vmatprep.subr.mxu0 0.0
    %v734 = vand.u32 %v174, 4294901760
    %735 = vmatpush1.msra.mxu0 %v734
    %736 = vmatprep.subr.mxu0 0.0
    %v737 = vand.u32 %v173, 4294901760
    %738 = vmatpush1.msra.mxu0 %v737
    %739 = vmatprep.subr.mxu0 0.0
    %v740 = vand.u32 %v172, 4294901760
    %741 = vmatpush1.msra.mxu0 %v740
    %742 = vmatprep.subr.mxu0 0.0
    %v743 = vand.u32 %v171, 4294901760
    %744 = vmatpush1.msra.mxu0 %v743
    %745 = vmatprep.subr.mxu0 0.0
    %v746 = vand.u32 %v170, 4294901760
    %747 = vmatpush1.msra.mxu0 %v746
    %748 = vmatprep.subr.mxu0 0.0
    %v749 = vand.u32 %v169, 4294901760
    %750 = vmatpush1.msra.mxu0 %v749
    %751 = vmatprep.subr.mxu0 0.0
    %v752 = vand.u32 %v168, 4294901760
    %753 = vmatpush1.msra.mxu0 %v752
    %754 = vmatprep.subr.mxu0 0.0
    %v755 = vand.u32 %v167, 4294901760
    %756 = vmatpush1.msra.mxu0 %v755
    %757 = vmatprep.subr.mxu0 0.0
    %v758 = vand.u32 %v166, 4294901760
    %759 = vmatpush1.msra.mxu0 %v758
    %760 = vmatprep.subr.mxu0 0.0
    %v761 = vand.u32 %v165, 4294901760
    %762 = vmatpush1.msra.mxu0 %v761
    %763 = vmatprep.subr.mxu0 0.0
    %v764 = vand.u32 %v164, 4294901760
    %765 = vmatpush1.msra.mxu0 %v764
    %766 = vmatprep.subr.mxu0 0.0
    %v767 = vand.u32 %v163, 4294901760
    %768 = vmatpush1.msra.mxu0 %v767
    %769 = vmatprep.subr.mxu0 0.0
    %v770 = vand.u32 %v162, 4294901760
    %771 = vmatpush1.msra.mxu0 %v770
    %772 = vmatprep.subr.mxu0 0.0
    %v773 = vand.u32 %v161, 4294901760
    %774 = vmatpush1.msra.mxu0 %v773
    %775 = vmatprep.subr.mxu0 0.0
    %v776 = vand.u32 %v160, 4294901760
    %777 = vmatpush1.msra.mxu0 %v776
    %778 = vmatprep.subr.mxu0 0.0
    %779 = vmatpush2.msra.mxu0 0.0
    %780 = vmatprep.subr.mxu0 0.0
    %781 = vmatpush2.msra.mxu0 0.0
    %782 = vmatprep.subr.mxu0 0.0
    %783 = vmatpush2.msra.mxu0 0.0
    %784 = vmatprep.subr.mxu0 0.0
    %785 = vmatpush2.msra.mxu0 0.0
    %786 = vmatprep.subr.mxu0 0.0
    %787 = vmatpush2.msra.mxu0 0.0
    %788 = vmatprep.subr.mxu0 0.0
    %789 = vmatpush2.msra.mxu0 0.0
    %790 = vmatprep.subr.mxu0 0.0
    %791 = vmatpush2.msra.mxu0 0.0
    %792 = vmatprep.subr.mxu0 0.0
    %793 = vmatpush2.msra.mxu0 0.0
    %794 = vmatprep.subr.mxu0 0.0
    %795 = vmatpush2.msra.mxu0 0.0
    %796 = vmatprep.subr.mxu0 0.0
    %797 = vmatpush2.msra.mxu0 0.0
    %798 = vmatprep.subr.mxu0 0.0
    %799 = vmatpush2.msra.mxu0 0.0
    %800 = vmatprep.subr.mxu0 0.0
    %801 = vmatpush2.msra.mxu0 0.0
    %802 = vmatprep.subr.mxu0 0.0
    %803 = vmatpush2.msra.mxu0 0.0
    %804 = vmatprep.subr.mxu0 0.0
    %805 = vmatpush2.msra.mxu0 0.0
    %806 = vmatprep.subr.mxu0 0.0
    %807 = vmatpush2.msra.mxu0 0.0
    %808 = vmatprep.subr.mxu0 0.0
    %809 = vmatpush2.msra.mxu0 0.0
    %810 = vmatprep.mubr.f32.mxu0 0.0
    %v811 = vand.u32 %v74, 4294901760
    %812 = vmatmul.mubr.f32.gmra.mxu0 %v811
    %v813 = vpop.f32.mrf.mxu0
    %v814 = vadd.f32 %v727, %v813
    %v815 = vpop.f32.mrf.mxu0
    %816 = vdwg.mxu0
    %v817 = vrsqrt.pop %v814
    %v818 = vmul.f32 %v814, %v817
    %vm819 = vcmp.eq.f32.partialorder %v814, inf
    %v820 = vsel %vm819, %v814, %v818
    %vm821 = vcmp.eq.f32.partialorder %v814, 0.0
    %v822 = vand.u32 %v814, 2147483648
    %v823 = vsel %vm821, %v822, %v820
    %v824 = vld [vmem:[%s62] sm:$0x3]
    %v825 = vsub.f32 1.0, %v823
    %v826 = vmax.f32 %v825, 0.0
    %v827 = vsub.f32 1.0, %v824
    %v828 = vmul.f32 %v827, %v814
    %v829 = vmul.f32 %v826, %v826
    %v830 = vmul.f32 %v824, %v829
    %v831 = vadd.f32 %v828, %v830
    %s832 = sadd.s32 0, 0
    %s833 = smul.u32 %s832, 2
    %v834 = vstv %s833
    %v835 = vadd.s32 %v834, %v76
    %v836 = vmul.u32 %v835, 4
    %v837 = vadd.s32 %v836, %v93
    %vm838 = vcmp.lt.s32.totalorder %v837, 8
    %v839 = vsel %vm838, %v831, 0.0
    %v840 = vld [vmem:[#allocation7] sm:$0x1]
    %vm841 = vcmask 25600
    %v842 = vsel %vm841, %v839, 0.0
    %843 = vadd.xlane.f32.xlu0 %v842
    %v844 = vpop.xlane.xlu0 %843
    %v845 = vrot.slane %v844, 4
    %v846 = vadd.f32 %v844, %v845
    %v847 = vrot.slane %v846, 2
    %v848 = vadd.f32 %v846, %v847
    %v849 = vrot.slane %v848, 1
    %v850 = vadd.f32 %v848, %v849
    %s851 = vtos %v850
    %v852 = vstv %s851
    %v853 = vadd.f32 %v840, %v852
    %vm854 = vcmask 0
    %855 = vst.msk [vmem:[#allocation7] sm:$0x1] %vm854, %v853
    // Predicated region
    $region26: #{tpu_custom_call.1} parent=1 // pred_check
      %p856 = pneg %p64
    $region27: #{tpu_custom_call.1} parent=1 // pred_check_branch
      %858 = sbr.rel (%p856) target = $region29
    $region28: #{tpu_custom_call.1} parent=1 // pred_region
      %v859 = vld [vmem:[#allocation7] sm:$0x1]
      %v860 = vmul.f32 %v859, 0.125
      %861 = vst.msk [vmem:[#allocation7] sm:$0x1] %vm854, %v860
    $region29: #{tpu_custom_call.1} parent=1 // pred_fallthru
      _
    // Predicated region
    $region30: #{tpu_custom_call.1} parent=1 // pred_check
      _
    $region31: #{tpu_custom_call.1} parent=1 // pred_check_branch
      %863 = sbr.rel (0) target = $region33
    $region32: #{tpu_custom_call.1} parent=1 // pred_region
      %s865 = ssub.s32 16, 16
      %866 = vsyncadd [#allocation4], %s865
      %s868 = sshll.u32 [#allocation7], 4
      %s869 = int_to_ptr.vmem [resolvable:$true] %s868
      %871 = dma.vmem_to_hbm [thread:$0]  %s869, 16, %s3, [#allocation4]
    $region33: #{tpu_custom_call.1} parent=1 // pred_fallthru
      _
    // Predicated region
    $region34: #{tpu_custom_call.1} parent=1 // pred_check
      _
    $region35: #{tpu_custom_call.1} parent=1 // pred_check_branch
      %873 = sbr.rel (0) target = $region37
    $region36: #{tpu_custom_call.1} parent=1 // pred_region
      %874 = dma.done [#allocation4], 16
    $region37: #{tpu_custom_call.1} parent=1 // pred_fallthru
      _
    %875 = vsyncpa [#allocation3], 1
    %876 = vsyncpa [#allocation6], 1
    %877 = vsyncpa [#allocation4], 1

</llo_original>
